<compile_context>
chip_gen: v6e
topology: v6e:2x2x1
jax: 0.10.0
libtpu: 0.0.40
codegen_flags: <defaults>
</compile_context>

<pallas_src>
from functools import partial

import jax
import jax.numpy as jnp
from jax.experimental import pallas as pl
from jax.experimental.pallas import tpu as pltpu


# ---------------------------------------------------------------------------
# Kernel
# ---------------------------------------------------------------------------
def _mlp_kernel(x_ref, w1_ref, b1_ref, w2_ref, b2_ref, w3_ref, b3_ref, o_ref):
    cd = w1_ref.dtype                      # matmul operand dtype (bf16 or f32)

    x = x_ref[...].astype(cd)              # (TB, in_dim)

    h1 = jnp.dot(x, w1_ref[...], preferred_element_type=jnp.float32) + b1_ref[...]
    h1 = jnp.maximum(h1, 0.0)              # f32 bias-add / ReLU (v5e friendly)

    h2 = jnp.dot(h1.astype(cd), w2_ref[...], preferred_element_type=jnp.float32) + b2_ref[...]
    h2 = jnp.maximum(h2, 0.0)

    out = jnp.dot(h2.astype(cd), w3_ref[...], preferred_element_type=jnp.float32) + b3_ref[...]
    o_ref[...] = out.astype(o_ref.dtype)


# ---------------------------------------------------------------------------
# Parameter prep (hoisted out of the hot path, done once per weight update)
# ---------------------------------------------------------------------------
def prepare_params(params, matmul_dtype=jnp.bfloat16, hidden_pad=128):
    """Transpose torch-style (out,in) weights to (in,out), zero-pad the hidden
    dim to `hidden_pad` (lane-dense intermediates), and cast once."""
    w1 = jnp.asarray(params["w1"], jnp.float32)   # (h, in_dim)
    w2 = jnp.asarray(params["w2"], jnp.float32)   # (h, h)
    w3 = jnp.asarray(params["w3"], jnp.float32)   # (out_dim, h)
    b1 = jnp.asarray(params["b1"], jnp.float32)   # (h,)
    b2 = jnp.asarray(params["b2"], jnp.float32)   # (h,)
    b3 = jnp.asarray(params["b3"], jnp.float32)   # (out_dim,)

    h = w1.shape[0]
    hp = max(hidden_pad, h)
    ph = hp - h                                    # zero padding (exact math)

    return {
        "w1t": jnp.pad(w1.T, ((0, 0), (0, ph))).astype(matmul_dtype),   # (in_dim, hp)
        "w2t": jnp.pad(w2.T, ((0, ph), (0, ph))).astype(matmul_dtype),  # (hp, hp)
        "w3t": jnp.pad(w3.T, ((0, ph), (0, 0))).astype(matmul_dtype),   # (hp, out_dim)
        "b1": jnp.pad(b1, (0, ph)).reshape(1, -1),                      # (1, hp) f32
        "b2": jnp.pad(b2, (0, ph)).reshape(1, -1),                      # (1, hp) f32
        "b3": b3.reshape(1, -1),                                        # (1, out_dim) f32
    }


def _round_up(x, m):
    return (x + m - 1) // m * m


def _choose_tile(B, block_b):
    """Batch tile: multiple of 8, <= block_b, and >= 2 grid steps when possible."""
    block_b = max(8, (int(block_b) // 8) * 8)      # multiple-of-8 guard
    b8 = _round_up(B, 8)
    tb = min(block_b, b8)
    # If the whole batch fits in one tile, split it in two so the "parallel"
    # grid axis can shard across both TensorCores on v7x.
    if tb >= b8 and b8 >= 16:
        tb = min(tb, _round_up(pl.cdiv(B, 2), 8))
    return tb


# ---------------------------------------------------------------------------
# Forward (jitted wrapper around the pallas_call)
# ---------------------------------------------------------------------------
@partial(jax.jit, static_argnames=("block_b", "out_dtype"))
def neural_network_forward(obs, prepared, block_b=1024, out_dtype=jnp.float32):
    """obs: (B, in_dim) or (in_dim,); prepared: output of prepare_params()."""
    obs = jnp.asarray(obs, dtype=jnp.float32)
    squeeze = obs.ndim == 1
    if squeeze:
        obs = obs[None, :]
    B, in_dim = obs.shape
    out_dim = prepared["w3t"].shape[1]

    tb = _choose_tile(B, block_b)
    grid = (pl.cdiv(B, tb),)                       # last block may be partial: no obs pad copy

    const = lambda i: (0, 0)                       # weights/biases resident every step
    in_specs = [
        pl.BlockSpec((tb, in_dim), lambda i: (i, 0)),          # obs tile
        pl.BlockSpec(prepared["w1t"].shape, const),
        pl.BlockSpec(prepared["b1"].shape, const),
        pl.BlockSpec(prepared["w2t"].shape, const),
        pl.BlockSpec(prepared["b2"].shape, const),
        pl.BlockSpec(prepared["w3t"].shape, const),
        pl.BlockSpec(prepared["b3"].shape, const),
    ]
    out_spec = pl.BlockSpec((tb, out_dim), lambda i: (i, 0))

    out = pl.pallas_call(
        _mlp_kernel,
        out_shape=jax.ShapeDtypeStruct((B, out_dim), out_dtype),
        grid=grid,
        in_specs=in_specs,
        out_specs=out_spec,
        compiler_params=pltpu.CompilerParams(
            dimension_semantics=("parallel",),     # megacore batch split on v7x
        ),
    )(
        obs,
        prepared["w1t"], prepared["b1"],
        prepared["w2t"], prepared["b2"],
        prepared["w3t"], prepared["b3"],
    )
    return out[0] if squeeze else out


# ---------------------------------------------------------------------------
# Init + reference
# ---------------------------------------------------------------------------
def init_params(key, in_dim, out_dim, hidden=64):
    """nn.Linear default init: U(-1/sqrt(fan_in), 1/sqrt(fan_in))."""
    ks = jax.random.split(key, 6)

    def linear(kw, kb, fan_in, fan_out):
        bound = 1.0 / jnp.sqrt(jnp.float32(fan_in))
        w = jax.random.uniform(kw, (fan_out, fan_in), jnp.float32, -bound, bound)
        b = jax.random.uniform(kb, (fan_out,), jnp.float32, -bound, bound)
        return w, b

    w1, b1 = linear(ks[0], ks[1], in_dim, hidden)
    w2, b2 = linear(ks[2], ks[3], hidden, hidden)
    w3, b3 = linear(ks[4], ks[5], hidden, out_dim)
    return {"w1": w1, "b1": b1, "w2": w2, "b2": b2, "w3": w3, "b3": b3}


def _reference_forward(obs, p):
    h1 = jnp.maximum(obs @ p["w1"].T + p["b1"], 0.0)
    h2 = jnp.maximum(h1 @ p["w2"].T + p["b2"], 0.0)
    return h2 @ p["w3"].T + p["b3"]


# ---------------------------------------------------------------------------
# Self-test
# ---------------------------------------------------------------------------
if __name__ == "__main__":
    key = jax.random.PRNGKey(0)
    k_obs, k_obs2, k_params = jax.random.split(key, 3)

    in_dim, out_dim = 32, 8
    params = init_params(k_params, in_dim, out_dim)

    prepared_bf16 = prepare_params(params, matmul_dtype=jnp.bfloat16)
    prepared_f32 = prepare_params(params, matmul_dtype=jnp.float32)

    # --- Case 1: tiny batch (B=8), single grid step, f32 matmul path -------
    B1 = 8
    obs1 = jax.random.normal(k_obs, (B1, in_dim), dtype=jnp.float32)
    out_f32 = jax.block_until_ready(neural_network_forward(obs1, prepared_f32))
    ref1 = _reference_forward(obs1, params)
    assert out_f32.shape == (B1, out_dim)
    assert jnp.allclose(out_f32, ref1, atol=1e-4, rtol=1e-4)

    # --- Case 2: non-tile-multiple batch, multi-step grid (partial last
    #     block, no obs padding copy), bf16 MXU operands -------------------
    B2 = 200
    obs2 = jax.random.normal(k_obs2, (B2, in_dim), dtype=jnp.float32)
    out_bf16 = jax.block_until_ready(
        neural_network_forward(obs2, prepared_bf16, block_b=64)
    )
    ref2 = _reference_forward(obs2, params)
    assert out_bf16.shape == (B2, out_dim)
    assert jnp.allclose(out_bf16, ref2, atol=5e-2, rtol=5e-2)

    # --- Case 3: default block_b -> whole batch fits one tile, so the
    #     megacore split kicks in (grid=(2,), second block partial) ---------
    out_split = jax.block_until_ready(neural_network_forward(obs2, prepared_f32))
    assert out_split.shape == (B2, out_dim)
    assert jnp.allclose(out_split, ref2, atol=1e-4, rtol=1e-4)

    print("KERNEL_OK")
</pallas_src>

<mosaic_0001>
module attributes {stable_mosaic.version = 11 : i64} {
  func.func @_mlp_kernel(%arg0: i32, %arg1: memref<8x32xf32, #tpu.memory_space<vmem>>, %arg2: memref<32x128xf32, #tpu.memory_space<vmem>>, %arg3: memref<1x128xf32, #tpu.memory_space<vmem>>, %arg4: memref<128x128xf32, #tpu.memory_space<vmem>>, %arg5: memref<1x128xf32, #tpu.memory_space<vmem>>, %arg6: memref<128x8xf32, #tpu.memory_space<vmem>>, %arg7: memref<1x8xf32, #tpu.memory_space<vmem>>, %arg8: memref<8x8xf32, #tpu.memory_space<vmem>>) attributes {dimension_semantics = [#tpu.dimension_semantics<parallel>], iteration_bounds = array<i64: 1>, scalar_prefetch = 0 : i64, scratch_operands = 0 : i64, tpu.core_type = #tpu.core_type<tc>, window_params = [{transform_indices = @transform_0, window_bounds = array<i64: 8, 32>}, {pipeline_mode = #tpu.pipeline_mode<synchronous>, transform_indices = @transform_1, window_bounds = array<i64: 32, 128>}, {pipeline_mode = #tpu.pipeline_mode<synchronous>, transform_indices = @transform_2, window_bounds = array<i64: 1, 128>}, {pipeline_mode = #tpu.pipeline_mode<synchronous>, transform_indices = @transform_3, window_bounds = array<i64: 128, 128>}, {pipeline_mode = #tpu.pipeline_mode<synchronous>, transform_indices = @transform_4, window_bounds = array<i64: 1, 128>}, {pipeline_mode = #tpu.pipeline_mode<synchronous>, transform_indices = @transform_5, window_bounds = array<i64: 128, 8>}, {pipeline_mode = #tpu.pipeline_mode<synchronous>, transform_indices = @transform_6, window_bounds = array<i64: 1, 8>}, {transform_indices = @transform_7, window_bounds = array<i64: 8, 8>}]} {
    %c0 = arith.constant 0 : index
    %c0_0 = arith.constant 0 : index
    %0 = vector.load %arg1[%c0, %c0_0] : memref<8x32xf32, #tpu.memory_space<vmem>>, vector<8x32xf32>
    %c0_1 = arith.constant 0 : index
    %c0_2 = arith.constant 0 : index
    %1 = vector.load %arg2[%c0_1, %c0_2] : memref<32x128xf32, #tpu.memory_space<vmem>>, vector<32x128xf32>
    %cst = arith.constant dense<0.000000e+00> : vector<8x128xf32>
    %2 = tpu.matmul %0, %1, %cst {dimension_numbers = #tpu.dot_dimension_numbers<[1], [0], [0], [1], [0, 0, 1, 1], [], []>} : vector<8x32xf32>, vector<32x128xf32>, vector<8x128xf32> -> vector<8x128xf32>
    %c0_3 = arith.constant 0 : index
    %c0_4 = arith.constant 0 : index
    %3 = vector.load %arg3[%c0_3, %c0_4] : memref<1x128xf32, #tpu.memory_space<vmem>>, vector<1x128xf32>
    %4 = vector.broadcast %3 : vector<1x128xf32> to vector<8x128xf32>
    %5 = arith.addf %2, %4 : vector<8x128xf32>
    %cst_5 = arith.constant 0.000000e+00 : f32
    %6 = vector.broadcast %cst_5 : f32 to vector<8x128xf32>
    %7 = arith.maximumf %5, %6 : vector<8x128xf32>
    %c0_6 = arith.constant 0 : index
    %c0_7 = arith.constant 0 : index
    %8 = vector.load %arg4[%c0_6, %c0_7] : memref<128x128xf32, #tpu.memory_space<vmem>>, vector<128x128xf32>
    %cst_8 = arith.constant dense<0.000000e+00> : vector<8x128xf32>
    %9 = tpu.matmul %7, %8, %cst_8 {dimension_numbers = #tpu.dot_dimension_numbers<[1], [0], [0], [1], [0, 0, 1, 1], [], []>} : vector<8x128xf32>, vector<128x128xf32>, vector<8x128xf32> -> vector<8x128xf32>
    %c0_9 = arith.constant 0 : index
    %c0_10 = arith.constant 0 : index
    %10 = vector.load %arg5[%c0_9, %c0_10] : memref<1x128xf32, #tpu.memory_space<vmem>>, vector<1x128xf32>
    %11 = vector.broadcast %10 : vector<1x128xf32> to vector<8x128xf32>
    %12 = arith.addf %9, %11 : vector<8x128xf32>
    %cst_11 = arith.constant 0.000000e+00 : f32
    %13 = vector.broadcast %cst_11 : f32 to vector<8x128xf32>
    %14 = arith.maximumf %12, %13 : vector<8x128xf32>
    %c0_12 = arith.constant 0 : index
    %c0_13 = arith.constant 0 : index
    %15 = vector.load %arg6[%c0_12, %c0_13] : memref<128x8xf32, #tpu.memory_space<vmem>>, vector<128x8xf32>
    %cst_14 = arith.constant dense<0.000000e+00> : vector<8x8xf32>
    %16 = tpu.matmul %14, %15, %cst_14 {dimension_numbers = #tpu.dot_dimension_numbers<[1], [0], [0], [1], [0, 0, 1, 1], [], []>} : vector<8x128xf32>, vector<128x8xf32>, vector<8x8xf32> -> vector<8x8xf32>
    %c0_15 = arith.constant 0 : index
    %c0_16 = arith.constant 0 : index
    %17 = vector.load %arg7[%c0_15, %c0_16] : memref<1x8xf32, #tpu.memory_space<vmem>>, vector<1x8xf32>
    %18 = vector.broadcast %17 : vector<1x8xf32> to vector<8x8xf32>
    %19 = arith.addf %16, %18 : vector<8x8xf32>
    %c0_17 = arith.constant 0 : index
    %c0_18 = arith.constant 0 : index
    %20 = vector.load %arg8[%c0_17, %c0_18] : memref<8x8xf32, #tpu.memory_space<vmem>>, vector<8x8xf32>
    tpu.vector_store %arg8[%c0_17, %c0_18], %19 {strides = array<i32>} : memref<8x8xf32, #tpu.memory_space<vmem>>, vector<8x8xf32>,
    return
  }
  func.func @transform_0(%arg0: i32) -> (i32, i32) {
    %c0_i32 = arith.constant 0 : i32
    %c0_i32_0 = arith.constant 0 : i32
    return %arg0, %c0_i32 : i32, i32
  }
  func.func @transform_1(%arg0: i32) -> (i32, i32) {
    %c0_i32 = arith.constant 0 : i32
    %c0_i32_0 = arith.constant 0 : i32
    %c0_i32_1 = arith.constant 0 : i32
    return %c0_i32, %c0_i32_0 : i32, i32
  }
  func.func @transform_2(%arg0: i32) -> (i32, i32) {
    %c0_i32 = arith.constant 0 : i32
    %c0_i32_0 = arith.constant 0 : i32
    %c0_i32_1 = arith.constant 0 : i32
    return %c0_i32, %c0_i32_0 : i32, i32
  }
  func.func @transform_3(%arg0: i32) -> (i32, i32) {
    %c0_i32 = arith.constant 0 : i32
    %c0_i32_0 = arith.constant 0 : i32
    %c0_i32_1 = arith.constant 0 : i32
    return %c0_i32, %c0_i32_0 : i32, i32
  }
  func.func @transform_4(%arg0: i32) -> (i32, i32) {
    %c0_i32 = arith.constant 0 : i32
    %c0_i32_0 = arith.constant 0 : i32
    %c0_i32_1 = arith.constant 0 : i32
    return %c0_i32, %c0_i32_0 : i32, i32
  }
  func.func @transform_5(%arg0: i32) -> (i32, i32) {
    %c0_i32 = arith.constant 0 : i32
    %c0_i32_0 = arith.constant 0 : i32
    %c0_i32_1 = arith.constant 0 : i32
    return %c0_i32, %c0_i32_0 : i32, i32
  }
  func.func @transform_6(%arg0: i32) -> (i32, i32) {
    %c0_i32 = arith.constant 0 : i32
    %c0_i32_0 = arith.constant 0 : i32
    %c0_i32_1 = arith.constant 0 : i32
    return %c0_i32, %c0_i32_0 : i32, i32
  }
  func.func @transform_7(%arg0: i32) -> (i32, i32) {
    %c0_i32 = arith.constant 0 : i32
    %c0_i32_0 = arith.constant 0 : i32
    return %arg0, %c0_i32 : i32, i32
  }
}

</mosaic_0001>

<llo_original>
// kernel: neural_network_forward.1
$region0: #{neural_network_forward.1}
  #allocation0 [shape = 'u32[]', space=smem, size = 0x4, offset = 0x4, fixed_abs, tag = 'smem constant byte address 0x4 - core index']
  #allocation1 [shape = 'u32[144,128]{1,0:T(1,128)}', space=vmem, size = 0x12000, scoped, tag = 'internal scratch']
  %s0 = inlined_call_operand.vmem [shape: f32[8,32], index: 0, kind: input, shape index: {}]
  %s1 = inlined_call_operand.hbm [shape: f32[32,128], index: 1, kind: input, shape index: {}]
  %s2 = inlined_call_operand.vmem [shape: f32[1,128], index: 2, kind: input, shape index: {}]
  %s3 = inlined_call_operand.vmem [shape: f32[128,128], index: 3, kind: input, shape index: {}]
  %s4 = inlined_call_operand.vmem [shape: f32[1,128], index: 4, kind: input, shape index: {}]
  %s5 = inlined_call_operand.vmem [shape: f32[128,8], index: 5, kind: input, shape index: {}]
  %s6 = inlined_call_operand.hbm [shape: f32[1,8], index: 6, kind: input, shape index: {}]
  %s7 = inlined_call_operand.hbm [shape: f32[8,8], index: 7, kind: output, shape index: {}]
  %s8 = sld [smem:[#allocation0]]
  $region46: #{neural_network_forward.1} parent=0
    _
  %s10 = ssub.s32 1, %s8
  %s11 = scalar_select 0, %s10, %s8
  $region1: #{neural_network_forward.1} parent=0
    #allocation2 [shape = 'u8[16384]{0}', space=vmem, size = 0x4000, scoped, tag = 'input window, operand 1, single buffered']
    #allocation3 [shape = 's32[1]{0}', space=sflag, size = 0x4, scoped, tag = 'scoped memory for neural_network_forward.1']
    #allocation4 [shape = 's32[1]{0}', space=sflag, size = 0x4, scoped, tag = 'scoped memory for neural_network_forward.1']
    #allocation5 [shape = 'u8[512]{0}', space=vmem, size = 0x400, scoped, tag = 'input window, operand 6, single buffered']
    #allocation6 [shape = 's32[1]{0}', space=sflag, size = 0x4, scoped, tag = 'scoped memory for neural_network_forward.1']
    #allocation7 [shape = 'u8[4096]{0}', space=vmem, size = 0x1000, scoped, tag = 'output window, operand 0, single buffered']
    %12 = vsyncpa [#allocation3], 0
    %13 = vsyncpa [#allocation6], 0
    %14 = vsyncpa [#allocation4], 0
    // Predicated region
    $region2: #{neural_network_forward.1} parent=1 // pred_check
      _
    $region3: #{neural_network_forward.1} parent=1 // pred_check_branch
      %16 = sbr.rel (0) target = $region5
    $region4: #{neural_network_forward.1} parent=1 // pred_region
      _
    $region5: #{neural_network_forward.1} parent=1 // pred_fallthru
      _
    // Predicated region
    $region6: #{neural_network_forward.1} parent=1 // pred_check
      _
    $region7: #{neural_network_forward.1} parent=1 // pred_check_branch
      %18 = sbr.rel (0) target = $region9
    $region8: #{neural_network_forward.1} parent=1 // pred_region
      %s20 = ssub.s32 512, 512
      %21 = vsyncadd [#allocation3], %s20
      %s22 = sshll.u32 [#allocation2], 4
      %s23 = int_to_ptr.vmem [resolvable:$true] %s22
      %28 = dma.hbm_to_vmem [thread:$0]  %s1, 512, %s23, [#allocation3], 128, 128, 8
    $region9: #{neural_network_forward.1} parent=1 // pred_fallthru
      _
    // Predicated region
    $region10: #{neural_network_forward.1} parent=1 // pred_check
      _
    $region11: #{neural_network_forward.1} parent=1 // pred_check_branch
      %30 = sbr.rel (0) target = $region13
    $region12: #{neural_network_forward.1} parent=1 // pred_region
      _
    $region13: #{neural_network_forward.1} parent=1 // pred_fallthru
      _
    // Predicated region
    $region14: #{neural_network_forward.1} parent=1 // pred_check
      _
    $region15: #{neural_network_forward.1} parent=1 // pred_check_branch
      %32 = sbr.rel (0) target = $region17
    $region16: #{neural_network_forward.1} parent=1 // pred_region
      _
    $region17: #{neural_network_forward.1} parent=1 // pred_fallthru
      _
    // Predicated region
    $region18: #{neural_network_forward.1} parent=1 // pred_check
      _
    $region19: #{neural_network_forward.1} parent=1 // pred_check_branch
      %34 = sbr.rel (0) target = $region21
    $region20: #{neural_network_forward.1} parent=1 // pred_region
      _
    $region21: #{neural_network_forward.1} parent=1 // pred_fallthru
      _
    // Predicated region
    $region22: #{neural_network_forward.1} parent=1 // pred_check
      _
    $region23: #{neural_network_forward.1} parent=1 // pred_check_branch
      %36 = sbr.rel (0) target = $region25
    $region24: #{neural_network_forward.1} parent=1 // pred_region
      _
    $region25: #{neural_network_forward.1} parent=1 // pred_fallthru
      _
    // Predicated region
    $region26: #{neural_network_forward.1} parent=1 // pred_check
      _
    $region27: #{neural_network_forward.1} parent=1 // pred_check_branch
      %38 = sbr.rel (0) target = $region29
    $region28: #{neural_network_forward.1} parent=1 // pred_region
      %s40 = ssub.s32 16, 16
      %41 = vsyncadd [#allocation6], %s40
      %s43 = sshll.u32 [#allocation5], 4
      %s44 = int_to_ptr.vmem [resolvable:$true] %s43
      %46 = dma.hbm_to_vmem [thread:$0]  %s6, 16, %s44, [#allocation6]
    $region29: #{neural_network_forward.1} parent=1 // pred_fallthru
      _
    // Predicated region
    $region30: #{neural_network_forward.1} parent=1 // pred_check
      _
    $region31: #{neural_network_forward.1} parent=1 // pred_check_branch
      %48 = sbr.rel (0) target = $region33
    $region32: #{neural_network_forward.1} parent=1 // pred_region
      %49 = dma.done [#allocation3], 512
    $region33: #{neural_network_forward.1} parent=1 // pred_fallthru
      _
    // Predicated region
    $region34: #{neural_network_forward.1} parent=1 // pred_check
      _
    $region35: #{neural_network_forward.1} parent=1 // pred_check_branch
      %51 = sbr.rel (0) target = $region37
    $region36: #{neural_network_forward.1} parent=1 // pred_region
      %52 = dma.done [#allocation6], 16
    $region37: #{neural_network_forward.1} parent=1 // pred_fallthru
      _
    %v53 = vld [vmem:[%s0] sm:$0xff]
    %v54 = vld [vmem:[#allocation2] sm:$0xff]
    %v55 = vld [vmem:[#allocation2 + $0x8] sm:$0xff]
    %v56 = vld [vmem:[#allocation2 + $0x10] sm:$0xff]
    %v57 = vld [vmem:[#allocation2 + $0x18] sm:$0xff]
    %v58 = vld [vmem:[%s2] sm:$0x1]
    %v60 = vlaneseq
    %v61 = vshrl.u32 %v60, 7
    %v62 = vsub.s32 0, %v61
    %v63 = vrot.slane %v58, %v62
    %vm65 = vcmask 261120
    %v67 = vsel %vm65, %v53, 0
    %69 = vmatprep.subr.mxu0 0.0
    %70 = vmatpush1.msra.mxu0 0.0
    %71 = vmatprep.subr.mxu0 0.0
    %72 = vmatpush1.msra.mxu0 0.0
    %73 = vmatprep.subr.mxu0 0.0
    %74 = vmatpush1.msra.mxu0 0.0
    %75 = vmatprep.subr.mxu0 0.0
    %76 = vmatpush1.msra.mxu0 0.0
    %77 = vmatprep.subr.mxu0 0.0
    %78 = vmatpush1.msra.mxu0 0.0
    %79 = vmatprep.subr.mxu0 0.0
    %80 = vmatpush1.msra.mxu0 0.0
    %81 = vmatprep.subr.mxu0 0.0
    %82 = vmatpush1.msra.mxu0 0.0
    %83 = vmatprep.subr.mxu0 0.0
    %84 = vmatpush1.msra.mxu0 0.0
    %85 = vmatprep.subr.mxu0 0.0
    %86 = vmatpush1.msra.mxu0 0.0
    %87 = vmatprep.subr.mxu0 0.0
    %88 = vmatpush1.msra.mxu0 0.0
    %89 = vmatprep.subr.mxu0 0.0
    %90 = vmatpush1.msra.mxu0 0.0
    %91 = vmatprep.subr.mxu0 0.0
    %92 = vmatpush1.msra.mxu0 0.0
    %93 = vmatprep.subr.mxu0 0.0
    %94 = vmatpush1.msra.mxu0 %v57
    %95 = vmatprep.subr.mxu0 0.0
    %96 = vmatpush1.msra.mxu0 %v56
    %97 = vmatprep.subr.mxu0 0.0
    %98 = vmatpush1.msra.mxu0 %v55
    %99 = vmatprep.subr.mxu0 0.0
    %100 = vmatpush1.msra.mxu0 %v54
    %101 = vmatprep.subr.mxu0 0.0
    %102 = vmatpush2.msra.mxu0 0.0
    %103 = vmatprep.subr.mxu0 0.0
    %104 = vmatpush2.msra.mxu0 0.0
    %105 = vmatprep.subr.mxu0 0.0
    %106 = vmatpush2.msra.mxu0 0.0
    %107 = vmatprep.subr.mxu0 0.0
    %108 = vmatpush2.msra.mxu0 0.0
    %109 = vmatprep.subr.mxu0 0.0
    %110 = vmatpush2.msra.mxu0 0.0
    %111 = vmatprep.subr.mxu0 0.0
    %112 = vmatpush2.msra.mxu0 0.0
    %113 = vmatprep.subr.mxu0 0.0
    %114 = vmatpush2.msra.mxu0 0.0
    %115 = vmatprep.subr.mxu0 0.0
    %116 = vmatpush2.msra.mxu0 0.0
    %117 = vmatprep.subr.mxu0 0.0
    %118 = vmatpush2.msra.mxu0 0.0
    %119 = vmatprep.subr.mxu0 0.0
    %120 = vmatpush2.msra.mxu0 0.0
    %121 = vmatprep.subr.mxu0 0.0
    %122 = vmatpush2.msra.mxu0 0.0
    %123 = vmatprep.subr.mxu0 0.0
    %124 = vmatpush2.msra.mxu0 0.0
    %125 = vmatprep.subr.mxu0 0.0
    %126 = vmatpush2.msra.mxu0 0.0
    %127 = vmatprep.subr.mxu0 0.0
    %128 = vmatpush2.msra.mxu0 0.0
    %129 = vmatprep.subr.mxu0 0.0
    %130 = vmatpush2.msra.mxu0 0.0
    %131 = vmatprep.subr.mxu0 0.0
    %132 = vmatpush2.msra.mxu0 0.0
    %133 = vmatprep.mubr.f32.mxu0 0.0
    %134 = vmatmul.mubr.f32.gmra.mxu0 %v67
    %v135 = vpop.f32.mrf.mxu0
    %v136 = vadd.f32 %v63, %v135
    %v137 = vpop.f32.mrf.mxu0
    %138 = vdwg.mxu0
    %v139 = vmax.f32 %v136, 0.0
    %v140 = vld [vmem:[%s3] sm:$0xff]
    %v141 = vld [vmem:[%s3 + $0x8] sm:$0xff]
    %v142 = vld [vmem:[%s3 + $0x10] sm:$0xff]
    %v143 = vld [vmem:[%s3 + $0x18] sm:$0xff]
    %v144 = vld [vmem:[%s3 + $0x20] sm:$0xff]
    %v145 = vld [vmem:[%s3 + $0x28] sm:$0xff]
    %v146 = vld [vmem:[%s3 + $0x30] sm:$0xff]
    %v147 = vld [vmem:[%s3 + $0x38] sm:$0xff]
    %v148 = vld [vmem:[%s3 + $0x40] sm:$0xff]
    %v149 = vld [vmem:[%s3 + $0x48] sm:$0xff]
    %v150 = vld [vmem:[%s3 + $0x50] sm:$0xff]
    %v151 = vld [vmem:[%s3 + $0x58] sm:$0xff]
    %v152 = vld [vmem:[%s3 + $0x60] sm:$0xff]
    %v153 = vld [vmem:[%s3 + $0x68] sm:$0xff]
    %v154 = vld [vmem:[%s3 + $0x70] sm:$0xff]
    %v155 = vld [vmem:[%s3 + $0x78] sm:$0xff]
    %v156 = vld [vmem:[%s4] sm:$0x1]
    %v158 = vlaneseq
    %v159 = vshrl.u32 %v158, 7
    %v160 = vsub.s32 0, %v159
    %v161 = vrot.slane %v156, %v160
    %163 = vmatprep.subr.mxu0 0.0
    %164 = vmatpush1.msra.mxu0 %v155
    %165 = vmatprep.subr.mxu0 0.0
    %166 = vmatpush1.msra.mxu0 %v154
    %167 = vmatprep.subr.mxu0 0.0
    %168 = vmatpush1.msra.mxu0 %v153
    %169 = vmatprep.subr.mxu0 0.0
    %170 = vmatpush1.msra.mxu0 %v152
    %171 = vmatprep.subr.mxu0 0.0
    %172 = vmatpush1.msra.mxu0 %v151
    %173 = vmatprep.subr.mxu0 0.0
    %174 = vmatpush1.msra.mxu0 %v150
    %175 = vmatprep.subr.mxu0 0.0
    %176 = vmatpush1.msra.mxu0 %v149
    %177 = vmatprep.subr.mxu0 0.0
    %178 = vmatpush1.msra.mxu0 %v148
    %179 = vmatprep.subr.mxu0 0.0
    %180 = vmatpush1.msra.mxu0 %v147
    %181 = vmatprep.subr.mxu0 0.0
    %182 = vmatpush1.msra.mxu0 %v146
    %183 = vmatprep.subr.mxu0 0.0
    %184 = vmatpush1.msra.mxu0 %v145
    %185 = vmatprep.subr.mxu0 0.0
    %186 = vmatpush1.msra.mxu0 %v144
    %187 = vmatprep.subr.mxu0 0.0
    %188 = vmatpush1.msra.mxu0 %v143
    %189 = vmatprep.subr.mxu0 0.0
    %190 = vmatpush1.msra.mxu0 %v142
    %191 = vmatprep.subr.mxu0 0.0
    %192 = vmatpush1.msra.mxu0 %v141
    %193 = vmatprep.subr.mxu0 0.0
    %194 = vmatpush1.msra.mxu0 %v140
    %195 = vmatprep.subr.mxu0 0.0
    %196 = vmatpush2.msra.mxu0 0.0
    %197 = vmatprep.subr.mxu0 0.0
    %198 = vmatpush2.msra.mxu0 0.0
    %199 = vmatprep.subr.mxu0 0.0
    %200 = vmatpush2.msra.mxu0 0.0
    %201 = vmatprep.subr.mxu0 0.0
    %202 = vmatpush2.msra.mxu0 0.0
    %203 = vmatprep.subr.mxu0 0.0
    %204 = vmatpush2.msra.mxu0 0.0
    %205 = vmatprep.subr.mxu0 0.0
    %206 = vmatpush2.msra.mxu0 0.0
    %207 = vmatprep.subr.mxu0 0.0
    %208 = vmatpush2.msra.mxu0 0.0
    %209 = vmatprep.subr.mxu0 0.0
    %210 = vmatpush2.msra.mxu0 0.0
    %211 = vmatprep.subr.mxu0 0.0
    %212 = vmatpush2.msra.mxu0 0.0
    %213 = vmatprep.subr.mxu0 0.0
    %214 = vmatpush2.msra.mxu0 0.0
    %215 = vmatprep.subr.mxu0 0.0
    %216 = vmatpush2.msra.mxu0 0.0
    %217 = vmatprep.subr.mxu0 0.0
    %218 = vmatpush2.msra.mxu0 0.0
    %219 = vmatprep.subr.mxu0 0.0
    %220 = vmatpush2.msra.mxu0 0.0
    %221 = vmatprep.subr.mxu0 0.0
    %222 = vmatpush2.msra.mxu0 0.0
    %223 = vmatprep.subr.mxu0 0.0
    %224 = vmatpush2.msra.mxu0 0.0
    %225 = vmatprep.subr.mxu0 0.0
    %226 = vmatpush2.msra.mxu0 0.0
    %227 = vmatprep.mubr.f32.mxu0 0.0
    %228 = vmatmul.mubr.f32.gmra.mxu0 %v139
    %v229 = vpop.f32.mrf.mxu0
    %v230 = vadd.f32 %v161, %v229
    %v231 = vpop.f32.mrf.mxu0
    %232 = vdwg.mxu0
    %v233 = vmax.f32 %v230, 0.0
    %v234 = vld [vmem:[%s5] sm:$0xff]
    %v235 = vld [vmem:[%s5 + $0x8] sm:$0xff]
    %v236 = vld [vmem:[%s5 + $0x10] sm:$0xff]
    %v237 = vld [vmem:[%s5 + $0x18] sm:$0xff]
    %v238 = vld [vmem:[%s5 + $0x20] sm:$0xff]
    %v239 = vld [vmem:[%s5 + $0x28] sm:$0xff]
    %v240 = vld [vmem:[%s5 + $0x30] sm:$0xff]
    %v241 = vld [vmem:[%s5 + $0x38] sm:$0xff]
    %v242 = vld [vmem:[%s5 + $0x40] sm:$0xff]
    %v243 = vld [vmem:[%s5 + $0x48] sm:$0xff]
    %v244 = vld [vmem:[%s5 + $0x50] sm:$0xff]
    %v245 = vld [vmem:[%s5 + $0x58] sm:$0xff]
    %v246 = vld [vmem:[%s5 + $0x60] sm:$0xff]
    %v247 = vld [vmem:[%s5 + $0x68] sm:$0xff]
    %v248 = vld [vmem:[%s5 + $0x70] sm:$0xff]
    %v249 = vld [vmem:[%s5 + $0x78] sm:$0xff]
    %v250 = vld [vmem:[#allocation5] sm:$0x1]
    %v252 = vlaneseq
    %v253 = vshrl.u32 %v252, 7
    %v254 = vsub.s32 0, %v253
    %v255 = vrot.slane %v250, %v254
    %257 = vmatprep.subr.mxu0 0.0
    %258 = vmatpush1.msra.mxu0 %v249
    %259 = vmatprep.subr.mxu0 0.0
    %260 = vmatpush1.msra.mxu0 %v248
    %261 = vmatprep.subr.mxu0 0.0
    %262 = vmatpush1.msra.mxu0 %v247
    %263 = vmatprep.subr.mxu0 0.0
    %264 = vmatpush1.msra.mxu0 %v246
    %265 = vmatprep.subr.mxu0 0.0
    %266 = vmatpush1.msra.mxu0 %v245
    %267 = vmatprep.subr.mxu0 0.0
    %268 = vmatpush1.msra.mxu0 %v244
    %269 = vmatprep.subr.mxu0 0.0
    %270 = vmatpush1.msra.mxu0 %v243
    %271 = vmatprep.subr.mxu0 0.0
    %272 = vmatpush1.msra.mxu0 %v242
    %273 = vmatprep.subr.mxu0 0.0
    %274 = vmatpush1.msra.mxu0 %v241
    %275 = vmatprep.subr.mxu0 0.0
    %276 = vmatpush1.msra.mxu0 %v240
    %277 = vmatprep.subr.mxu0 0.0
    %278 = vmatpush1.msra.mxu0 %v239
    %279 = vmatprep.subr.mxu0 0.0
    %280 = vmatpush1.msra.mxu0 %v238
    %281 = vmatprep.subr.mxu0 0.0
    %282 = vmatpush1.msra.mxu0 %v237
    %283 = vmatprep.subr.mxu0 0.0
    %284 = vmatpush1.msra.mxu0 %v236
    %285 = vmatprep.subr.mxu0 0.0
    %286 = vmatpush1.msra.mxu0 %v235
    %287 = vmatprep.subr.mxu0 0.0
    %288 = vmatpush1.msra.mxu0 %v234
    %289 = vmatprep.subr.mxu0 0.0
    %290 = vmatpush2.msra.mxu0 0.0
    %291 = vmatprep.subr.mxu0 0.0
    %292 = vmatpush2.msra.mxu0 0.0
    %293 = vmatprep.subr.mxu0 0.0
    %294 = vmatpush2.msra.mxu0 0.0
    %295 = vmatprep.subr.mxu0 0.0
    %296 = vmatpush2.msra.mxu0 0.0
    %297 = vmatprep.subr.mxu0 0.0
    %298 = vmatpush2.msra.mxu0 0.0
    %299 = vmatprep.subr.mxu0 0.0
    %300 = vmatpush2.msra.mxu0 0.0
    %301 = vmatprep.subr.mxu0 0.0
    %302 = vmatpush2.msra.mxu0 0.0
    %303 = vmatprep.subr.mxu0 0.0
    %304 = vmatpush2.msra.mxu0 0.0
    %305 = vmatprep.subr.mxu0 0.0
    %306 = vmatpush2.msra.mxu0 0.0
    %307 = vmatprep.subr.mxu0 0.0
    %308 = vmatpush2.msra.mxu0 0.0
    %309 = vmatprep.subr.mxu0 0.0
    %310 = vmatpush2.msra.mxu0 0.0
    %311 = vmatprep.subr.mxu0 0.0
    %312 = vmatpush2.msra.mxu0 0.0
    %313 = vmatprep.subr.mxu0 0.0
    %314 = vmatpush2.msra.mxu0 0.0
    %315 = vmatprep.subr.mxu0 0.0
    %316 = vmatpush2.msra.mxu0 0.0
    %317 = vmatprep.subr.mxu0 0.0
    %318 = vmatpush2.msra.mxu0 0.0
    %319 = vmatprep.subr.mxu0 0.0
    %320 = vmatpush2.msra.mxu0 0.0
    %321 = vmatprep.mubr.f32.mxu0 0.0
    %322 = vmatmul.mubr.f32.gmra.mxu0 %v233
    %v323 = vpop.f32.mrf.mxu0
    %v324 = vadd.f32 %v255, %v323
    %v325 = vpop.f32.mrf.mxu0
    %326 = vdwg.mxu0
    %vm327 = vcmask 64512
    %328 = vst.msk [vmem:[#allocation7] sm:$0xff] %vm327, %v324
    // Predicated region
    $region38: #{neural_network_forward.1} parent=1 // pred_check
      _
    $region39: #{neural_network_forward.1} parent=1 // pred_check_branch
      %330 = sbr.rel (0) target = $region41
    $region40: #{neural_network_forward.1} parent=1 // pred_region
      %s332 = ssub.s32 128, 128
      %333 = vsyncadd [#allocation4], %s332
      %s335 = sshll.u32 [#allocation7], 4
      %s336 = int_to_ptr.vmem [resolvable:$true] %s335
      %338 = dma.vmem_to_hbm [thread:$0]  %s336, 128, %s7, [#allocation4]
    $region41: #{neural_network_forward.1} parent=1 // pred_fallthru
      _
    // Predicated region
    $region42: #{neural_network_forward.1} parent=1 // pred_check
      _
    $region43: #{neural_network_forward.1} parent=1 // pred_check_branch
      %340 = sbr.rel (0) target = $region45
    $region44: #{neural_network_forward.1} parent=1 // pred_region
      %341 = dma.done [#allocation4], 128
    $region45: #{neural_network_forward.1} parent=1 // pred_fallthru
      _
    %342 = vsyncpa [#allocation3], 1
    %343 = vsyncpa [#allocation6], 1
    %344 = vsyncpa [#allocation4], 1

</llo_original>
